<compile_context>
chip_gen: v5e
topology: v5e:2x2
jax: 0.10.0
libtpu: 0.0.40
codegen_flags: <defaults>
</compile_context>

<pallas_src>
import functools
import math

import jax
import jax.numpy as jnp
from jax.experimental import pallas as pl
from jax.experimental.pallas import tpu as pltpu


def _round_up(x: int, m: int) -> int:
    return (x + m - 1) // m * m


def _vmem_capacity_bytes() -> int:
    try:
        cap = getattr(pltpu.get_tpu_info(), "vmem_capacity_bytes", None)
        if cap:
            return int(cap)
    except Exception:
        pass
    return 64 * 1024 * 1024  # conservative default (v7x per-TensorCore VMEM)


def _footprint_bytes(tm, th, d, compute_bytes, out_bytes, acc_in_output):
    """Estimated double-buffered VMEM footprint of one grid step."""
    x_blk = tm * d * compute_bytes
    w1_blk = d * th * compute_bytes
    b1_blk = th * 4
    w2_blk = th * d * compute_bytes
    b2_blk = d * 4
    out_blk = tm * d * out_bytes
    double_buffered = 2 * (x_blk + w1_blk + b1_blk + w2_blk + b2_blk + out_blk)
    acc = 0 if acc_in_output else tm * d * 4
    return double_buffered + acc


def _select_tiles(m, h, d, compute_bytes, out_bytes, acc_in_output, budget):
    """Pick (tm, th): maximize tm first (dominant HBM-traffic lever), then th."""
    m_cap = _round_up(max(m, 1), 8)
    tm_cands = [c for c in (1024, 512, 256, 128, 64, 32, 16, 8) if c <= m_cap]
    if not tm_cands:
        tm_cands = [m_cap]
    # Keep the 'parallel' row axis at >= 2 tiles when M permits so both v7x
    # TensorCores get work (negligible cost on 1-TC chips).
    if m_cap >= 16:
        two_tile_cap = max(8, (m_cap // 2) // 8 * 8)
        tm_cands = [min(c, two_tile_cap) for c in tm_cands]

    if h >= 128:
        th_cands = [c for c in (1024, 512, 256, 128) if c <= _round_up(h, 128)]
        if not th_cands:
            th_cands = [128]
    else:
        th_cands = [h]  # small hidden dim: single full-extent block

    for tm in tm_cands:
        for th in th_cands:
            if _footprint_bytes(tm, th, d, compute_bytes, out_bytes,
                                acc_in_output) <= budget:
                return tm, th
    return tm_cands[-1], th_cands[-1]


def _ffn_kernel(x_ref, w1_ref, b1_ref, w2_ref, b2_ref, o_ref, *scratch,
                compute_dtype, acc_in_output):
    acc_ref = o_ref if acc_in_output else scratch[0]
    h_idx = pl.program_id(1)

    @pl.when(h_idx == 0)
    def _init():
        # Start the running sum at the output bias (added exactly once per row tile).
        acc_ref[...] = jnp.broadcast_to(
            b2_ref[...].astype(acc_ref.dtype), acc_ref.shape)

    # Hidden tile: relu(x @ W1^T_tile + b1_tile).  Standard (M,K)x(K,N) MXU feed.
    h = jnp.dot(x_ref[...], w1_ref[...], preferred_element_type=jnp.float32)
    h = jnp.maximum(h + b1_ref[...], 0.0)  # f32 bias-add / ReLU

    # Partial second matmul: h_tile @ W2^T_tile -> (tm, D), accumulated in f32.
    acc_ref[...] += jnp.dot(
        h.astype(compute_dtype), w2_ref[...],
        preferred_element_type=jnp.float32).astype(acc_ref.dtype)

    if not acc_in_output:
        @pl.when(h_idx == pl.num_programs(1) - 1)
        def _writeback():
            o_ref[...] = acc_ref[...].astype(o_ref.dtype)


def feed_forward(params, x, *, compute_dtype=jnp.bfloat16):
    """linear2(relu(linear1(x))) with PyTorch nn.Linear weight layout.

    params: {"w1": (H, D), "b1": (H,), "w2": (D, H), "b2": (D,)}; x: (..., D).
    Matmuls run in `compute_dtype` (bf16 by default -- the peak MXU path); bias-add,
    ReLU and accumulation stay in float32.  Pass compute_dtype=x.dtype for exact f32.
    """
    w1, b1, w2, b2 = params["w1"], params["b1"], params["w2"], params["b2"]

    lead = x.shape[:-1]
    d_model = x.shape[-1]
    d_hidden = w1.shape[0]
    assert w1.shape == (d_hidden, d_model), w1.shape
    assert w2.shape == (d_model, d_hidden), w2.shape
    assert b1.shape == (d_hidden,) and b2.shape == (d_model,)

    out_dtype = x.dtype
    acc_in_output = out_dtype == jnp.float32

    x2 = x.reshape(-1, d_model)
    m = x2.shape[0]

    compute_bytes = jnp.dtype(compute_dtype).itemsize
    out_bytes = jnp.dtype(out_dtype).itemsize
    capacity = _vmem_capacity_bytes()
    budget = int(capacity * 0.55)

    tm, th = _select_tiles(m, d_hidden, d_model, compute_bytes, out_bytes,
                           acc_in_output, budget)
    m_pad = _round_up(m, tm)
    h_pad = _round_up(d_hidden, th)

    # One-time HBM-side transpose + cast: both in-kernel matmuls become standard
    # (M,K)x(K,N) MXU feeds, and bf16 weights halve the per-row-tile weight DMA.
    w1t = w1.T.astype(compute_dtype)               # (D, H)
    w2t = w2.T.astype(compute_dtype)               # (H, D)
    xc = x2.astype(compute_dtype)                  # (M, D)
    b1_2d = b1.astype(jnp.float32).reshape(1, d_hidden)
    b2_2d = b2.astype(jnp.float32).reshape(1, d_model)

    # Zero-pad M / H to tile multiples (padded hidden columns contribute exactly 0).
    if m_pad != m:
        xc = jnp.pad(xc, ((0, m_pad - m), (0, 0)))
    if h_pad != d_hidden:
        w1t = jnp.pad(w1t, ((0, 0), (0, h_pad - d_hidden)))
        b1_2d = jnp.pad(b1_2d, ((0, 0), (0, h_pad - d_hidden)))
        w2t = jnp.pad(w2t, ((0, h_pad - d_hidden), (0, 0)))

    grid = (m_pad // tm, h_pad // th)

    footprint = _footprint_bytes(tm, th, d_model, compute_bytes, out_bytes,
                                 acc_in_output)
    vmem_limit = int(min(0.9 * capacity,
                         max(32 * 1024 * 1024,
                             footprint + footprint // 2 + (8 << 20))))

    kernel = functools.partial(_ffn_kernel, compute_dtype=compute_dtype,
                               acc_in_output=acc_in_output)
    scratch_shapes = [] if acc_in_output else [pltpu.VMEM((tm, d_model), jnp.float32)]

    # TODO(synk): if profiling still shows exposed weight DMA after bf16 + large tm,
    # add pipeline_mode=pl.Buffered(3) on the w1t/w2t specs where VMEM headroom allows.
    out = pl.pallas_call(
        kernel,
        out_shape=jax.ShapeDtypeStruct((m_pad, d_model), out_dtype),
        grid=grid,
        in_specs=[
            pl.BlockSpec((tm, d_model), lambda i, h: (i, 0)),   # x rows (resident over h)
            pl.BlockSpec((d_model, th), lambda i, h: (0, h)),   # W1^T hidden-column tile
            pl.BlockSpec((1, th), lambda i, h: (0, h)),         # b1 tile
            pl.BlockSpec((th, d_model), lambda i, h: (h, 0)),   # W2^T hidden-row tile
            pl.BlockSpec((1, d_model), lambda i, h: (0, 0)),    # b2 (whole vector)
        ],
        out_specs=pl.BlockSpec((tm, d_model), lambda i, h: (i, 0)),
        scratch_shapes=scratch_shapes,
        compiler_params=pltpu.CompilerParams(
            dimension_semantics=("parallel", "arbitrary"),
            vmem_limit_bytes=vmem_limit,
        ),
    )(xc, w1t, b1_2d, w2t, b2_2d)

    if m_pad != m:
        out = out[:m]
    return out.reshape(*lead, d_model)


if __name__ == "__main__":
    B, T = 2, 8
    d_model, d_hidden = 32, 64

    root = jax.random.PRNGKey(0)
    ks = jax.random.split(root, 5)

    x = jax.random.normal(ks[0], (B, T, d_model), jnp.float32)

    def init_linear(kw, kb, out_dim, in_dim):
        bound = 1.0 / math.sqrt(in_dim)
        w = jax.random.uniform(kw, (out_dim, in_dim), jnp.float32, -bound, bound)
        b = jax.random.uniform(kb, (out_dim,), jnp.float32, -bound, bound)
        return w, b

    w1, b1 = init_linear(ks[1], ks[2], d_hidden, d_model)  # nn.Linear(d_model, d_hidden)
    w2, b2 = init_linear(ks[3], ks[4], d_model, d_hidden)  # nn.Linear(d_hidden, d_model)
    params = {"w1": w1, "b1": b1, "w2": w2, "b2": b2}

    ref = jnp.maximum(x @ w1.T + b1, 0.0) @ w2.T + b2

    # Optimized default path: bf16 MXU matmuls, f32 accumulation.
    out_bf16 = feed_forward(params, x)
    jax.block_until_ready(out_bf16)
    assert out_bf16.shape == (B, T, d_model), out_bf16.shape
    assert out_bf16.dtype == jnp.float32
    err_bf16 = float(jnp.max(jnp.abs(out_bf16 - ref)))
    assert jnp.allclose(out_bf16, ref, rtol=2e-2, atol=2e-2), err_bf16

    # Bit-faithful f32 path (matches PyTorch reference tightly).
    out_f32 = feed_forward(params, x, compute_dtype=jnp.float32)
    jax.block_until_ready(out_f32)
    err_f32 = float(jnp.max(jnp.abs(out_f32 - ref)))
    assert jnp.allclose(out_f32, ref, rtol=1e-4, atol=1e-4), err_f32

    print("KERNEL_OK")
</pallas_src>

<mosaic_0001>
module attributes {stable_mosaic.version = 11 : i64} {
  func.func @_ffn_kernel(%arg0: i32, %arg1: i32, %arg2: memref<8x32xbf16, #tpu.memory_space<vmem>>, %arg3: memref<32x64xbf16, #tpu.memory_space<vmem>>, %arg4: memref<1x64xf32, #tpu.memory_space<vmem>>, %arg5: memref<64x32xbf16, #tpu.memory_space<vmem>>, %arg6: memref<1x32xf32, #tpu.memory_space<vmem>>, %arg7: memref<8x32xf32, #tpu.memory_space<vmem>>) attributes {dimension_semantics = [#tpu.dimension_semantics<parallel>, #tpu.dimension_semantics<arbitrary>], iteration_bounds = array<i64: 2, 1>, scalar_prefetch = 0 : i64, scratch_operands = 0 : i64, tpu.core_type = #tpu.core_type<tc>, window_params = [{transform_indices = @transform_0, window_bounds = array<i64: 8, 32>}, {transform_indices = @transform_1, window_bounds = array<i64: 32, 64>}, {transform_indices = @transform_2, window_bounds = array<i64: 1, 64>}, {transform_indices = @transform_3, window_bounds = array<i64: 64, 32>}, {pipeline_mode = #tpu.pipeline_mode<synchronous>, transform_indices = @transform_4, window_bounds = array<i64: 1, 32>}, {transform_indices = @transform_5, window_bounds = array<i64: 8, 32>}]} {
    %c0_i32 = arith.constant 0 : i32
    %0 = arith.cmpi eq, %arg1, %c0_i32 : i32
    %1 = arith.extui %0 : i1 to i32
    %c0_i32_0 = arith.constant 0 : i32
    %2 = arith.cmpi ne, %1, %c0_i32_0 : i32
    scf.if %2 {
      %c0_14 = arith.constant 0 : index
      %c0_15 = arith.constant 0 : index
      %17 = vector.load %arg6[%c0_14, %c0_15] : memref<1x32xf32, #tpu.memory_space<vmem>>, vector<1x32xf32>
      %18 = vector.shape_cast %17 : vector<1x32xf32> to vector<1x32xf32>
      %19 = vector.broadcast %18 : vector<1x32xf32> to vector<8x32xf32>
      %c0_16 = arith.constant 0 : index
      %c0_17 = arith.constant 0 : index
      %20 = vector.load %arg7[%c0_16, %c0_17] : memref<8x32xf32, #tpu.memory_space<vmem>>, vector<8x32xf32>
      tpu.vector_store %arg7[%c0_16, %c0_17], %19 {strides = array<i32>} : memref<8x32xf32, #tpu.memory_space<vmem>>, vector<8x32xf32>,
    } else {
    }
    %c0 = arith.constant 0 : index
    %c0_1 = arith.constant 0 : index
    %3 = vector.load %arg2[%c0, %c0_1] : memref<8x32xbf16, #tpu.memory_space<vmem>>, vector<8x32xbf16>
    %c0_2 = arith.constant 0 : index
    %c0_3 = arith.constant 0 : index
    %4 = vector.load %arg3[%c0_2, %c0_3] : memref<32x64xbf16, #tpu.memory_space<vmem>>, vector<32x64xbf16>
    %cst = arith.constant dense<0.000000e+00> : vector<8x64xf32>
    %5 = tpu.matmul %3, %4, %cst {dimension_numbers = #tpu.dot_dimension_numbers<[1], [0], [0], [1], [0, 0, 1, 1], [], []>} : vector<8x32xbf16>, vector<32x64xbf16>, vector<8x64xf32> -> vector<8x64xf32>
    %c0_4 = arith.constant 0 : index
    %c0_5 = arith.constant 0 : index
    %6 = vector.load %arg4[%c0_4, %c0_5] : memref<1x64xf32, #tpu.memory_space<vmem>>, vector<1x64xf32>
    %7 = vector.broadcast %6 : vector<1x64xf32> to vector<8x64xf32>
    %8 = arith.addf %5, %7 : vector<8x64xf32>
    %cst_6 = arith.constant 0.000000e+00 : f32
    %9 = vector.broadcast %cst_6 : f32 to vector<8x64xf32>
    %10 = arith.maximumf %8, %9 : vector<8x64xf32>
    %c0_7 = arith.constant 0 : index
    %c0_8 = arith.constant 0 : index
    %11 = vector.load %arg7[%c0_7, %c0_8] : memref<8x32xf32, #tpu.memory_space<vmem>>, vector<8x32xf32>
    %12 = arith.truncf %10 : vector<8x64xf32> to vector<8x64xbf16>
    %c0_9 = arith.constant 0 : index
    %c0_10 = arith.constant 0 : index
    %13 = vector.load %arg5[%c0_9, %c0_10] : memref<64x32xbf16, #tpu.memory_space<vmem>>, vector<64x32xbf16>
    %cst_11 = arith.constant dense<0.000000e+00> : vector<8x32xf32>
    %14 = tpu.matmul %12, %13, %cst_11 {dimension_numbers = #tpu.dot_dimension_numbers<[1], [0], [0], [1], [0, 0, 1, 1], [], []>} : vector<8x64xbf16>, vector<64x32xbf16>, vector<8x32xf32> -> vector<8x32xf32>
    %15 = arith.addf %11, %14 : vector<8x32xf32>
    %c0_12 = arith.constant 0 : index
    %c0_13 = arith.constant 0 : index
    %16 = vector.load %arg7[%c0_12, %c0_13] : memref<8x32xf32, #tpu.memory_space<vmem>>, vector<8x32xf32>
    tpu.vector_store %arg7[%c0_12, %c0_13], %15 {strides = array<i32>} : memref<8x32xf32, #tpu.memory_space<vmem>>, vector<8x32xf32>,
    return
  }
  func.func @transform_0(%arg0: i32, %arg1: i32) -> (i32, i32) {
    %c0_i32 = arith.constant 0 : i32
    %c0_i32_0 = arith.constant 0 : i32
    return %arg0, %c0_i32 : i32, i32
  }
  func.func @transform_1(%arg0: i32, %arg1: i32) -> (i32, i32) {
    %c0_i32 = arith.constant 0 : i32
    %c0_i32_0 = arith.constant 0 : i32
    return %c0_i32, %arg1 : i32, i32
  }
  func.func @transform_2(%arg0: i32, %arg1: i32) -> (i32, i32) {
    %c0_i32 = arith.constant 0 : i32
    %c0_i32_0 = arith.constant 0 : i32
    return %c0_i32, %arg1 : i32, i32
  }
  func.func @transform_3(%arg0: i32, %arg1: i32) -> (i32, i32) {
    %c0_i32 = arith.constant 0 : i32
    %c0_i32_0 = arith.constant 0 : i32
    return %arg1, %c0_i32 : i32, i32
  }
  func.func @transform_4(%arg0: i32, %arg1: i32) -> (i32, i32) {
    %c0_i32 = arith.constant 0 : i32
    %c0_i32_0 = arith.constant 0 : i32
    %c0_i32_1 = arith.constant 0 : i32
    return %c0_i32, %c0_i32_0 : i32, i32
  }
  func.func @transform_5(%arg0: i32, %arg1: i32) -> (i32, i32) {
    %c0_i32 = arith.constant 0 : i32
    %c0_i32_0 = arith.constant 0 : i32
    return %arg0, %c0_i32 : i32, i32
  }
}

</mosaic_0001>

<llo_original>
// kernel: tpu_custom_call.1
$region0: #{tpu_custom_call.1}
  #allocation0 [shape = 'u32[]', space=smem, size = 0x4, offset = 0x4, fixed_abs, tag = 'smem constant byte address 0x4 - core index']
  #allocation1 [shape = 'u32[72,128]{1,0:T(1,128)}', space=vmem, size = 0x9000, scoped, tag = 'internal scratch']
  %s0 = inlined_call_operand.vmem [shape: bf16[16,32], index: 0, kind: input, shape index: {}]
  %s1 = inlined_call_operand.vmem [shape: bf16[32,64], index: 1, kind: input, shape index: {}]
  %s2 = inlined_call_operand.vmem [shape: f32[1,64], index: 2, kind: input, shape index: {}]
  %s3 = inlined_call_operand.vmem [shape: bf16[64,32], index: 3, kind: input, shape index: {}]
  %s4 = inlined_call_operand.vmem [shape: f32[1,32], index: 4, kind: input, shape index: {}]
  %s5 = inlined_call_operand.hbm [shape: f32[16,32], index: 5, kind: output, shape index: {}]
  %s6 = sld [smem:[#allocation0]]
  $region57: #{tpu_custom_call.1} parent=0
    _
  %s8 = ssub.s32 1, %s6
  %s9 = scalar_select 0, %s8, %s6
  $region1: #{tpu_custom_call.1} parent=0
    #allocation2 [shape = 'u8[8192]{0}', space=vmem, size = 0x2000, scoped, tag = 'output window, operand 0']
    #allocation3 [shape = 's32[2]{0}', space=sflag, size = 0x8, scoped, tag = 'scoped memory for tpu_custom_call.1']
    %10 = vsyncpa [#allocation3], 0
    %s11 = scalar_lea.sflag [#allocation3], 1
    %12 = vsyncpa %s11, 0
    loop: start=0, step=1, limit=4
    $region2: #{tpu_custom_call.1} parent=1 // loop_pre_header
      _
    $region3: #{tpu_custom_call.1} parent=1 // loop_header
      %s14 = sphi 0, %s18
      %p15 = scmp.ge.s32.totalorder %s14, 4
      %s21 = sphi 0, %s33
      %s22 = sphi 0, %s29
      %s23 = sphi 0, %s21
      %s24 = sphi 0, %s22
      %s25 = sphi 0, %s23
      %s26 = sphi 0, %s24
      %s36 = sphi 0, %s38
      %s39 = sphi 0, %s36
      %s40 = sphi 0, %s39
      %s56 = sphi 0, %s40
      %s62 = sphi 0, %s64
      %s65 = sphi 0, %s62
      %s66 = sphi 0, %s65
      %s82 = sphi 0, %s66
      %s88 = sphi 0, %s90
      %s91 = sphi 0, %s88
      %s92 = sphi 0, %s91
      %s108 = sphi 0, %s92
      %s114 = sphi 0, %s116
      %s117 = sphi 0, %s114
      %s118 = sphi 0, %s117
      %s134 = sphi 0, %s118
      %s138 = sphi 0, %s138
      %s140 = sphi 0, %s138
      %s141 = sphi 0, %s140
      %s155 = sphi 0, %s141
      %s161 = sphi 0, %s163
      %s164 = sphi 0, %s161
      %s165 = sphi 0, %s164
      %s181 = sphi 0, %s165
    $region4: #{tpu_custom_call.1} parent=1 // loop_header_branch
      %17 = sbr.rel (%p15) target = $region8
    $region5: #{tpu_custom_call.1} parent=1 // loop_body
      %s19 = ssub.s32 %s14, 1
      %s20 = ssub.s32 %s14, 2
      %s27 = sadd.s32 1, %s22
      %p28 = scmp.ge.s32.totalorder %s27, 1
      %s29 = scalar_select %p28, 0, %s27
      %s30 = sadd.s32 1, %s21
      %s31 = scalar_select %p28, %s30, %s21
      %p32 = scmp.ge.s32.totalorder %s31, 2
      %s33 = scalar_select %p32, 0, %s31
      %s34 = ssub.s32 %s21, %s33
      %p35 = scmp.eq.s32.totalorder %s34, 0
      %s37 = sadd.s32 %s36, 1
      %s38 = scalar_select %p35, %s36, %s37
      %p41 = pneg %p35
      %p42 = scmp.eq.s32.totalorder %s14, 1
      %p43 = por %p41, %p42
      %p44 = scmp.ne.s32.totalorder %s36, %s39
      %p45 = scmp.eq.s32.totalorder %s14, 0
      %p46 = por %p44, %p45
      %p47 = scmp.ne.s32.totalorder %s36, %s39
      %p48 = scmp.eq.s32.totalorder %s19, 1
      %p49 = por %p47, %p48
      %p50 = scmp.ne.s32.totalorder %s39, %s40
      %p51 = scmp.eq.s32.totalorder %s19, 0
      %p52 = por %p50, %p51
      %p53 = scmp.ne.s32.totalorder %s39, %s40
      %p54 = scmp.eq.s32.totalorder %s20, 1
      %p55 = por %p53, %p54
      %p57 = scmp.ne.s32.totalorder %s40, %s56
      %p58 = scmp.eq.s32.totalorder %s20, 0
      %p59 = por %p57, %p58
      %s60 = ssub.s32 %s22, %s29
      %p61 = scmp.eq.s32.totalorder %s60, 0
      %s63 = sadd.s32 %s62, 1
      %s64 = scalar_select %p61, %s62, %s63
      %p67 = pneg %p61
      %p68 = scmp.eq.s32.totalorder %s14, 1
      %p69 = por %p67, %p68
      %p70 = scmp.ne.s32.totalorder %s62, %s65
      %p71 = scmp.eq.s32.totalorder %s14, 0
      %p72 = por %p70, %p71
      %p73 = scmp.ne.s32.totalorder %s62, %s65
      %p74 = scmp.eq.s32.totalorder %s19, 1
      %p75 = por %p73, %p74
      %p76 = scmp.ne.s32.totalorder %s65, %s66
      %p77 = scmp.eq.s32.totalorder %s19, 0
      %p78 = por %p76, %p77
      %p79 = scmp.ne.s32.totalorder %s65, %s66
      %p80 = scmp.eq.s32.totalorder %s20, 1
      %p81 = por %p79, %p80
      %p83 = scmp.ne.s32.totalorder %s66, %s82
      %p84 = scmp.eq.s32.totalorder %s20, 0
      %p85 = por %p83, %p84
      %s86 = ssub.s32 %s22, %s29
      %p87 = scmp.eq.s32.totalorder %s86, 0
      %s89 = sadd.s32 %s88, 1
      %s90 = scalar_select %p87, %s88, %s89
      %p93 = pneg %p87
      %p94 = scmp.eq.s32.totalorder %s14, 1
      %p95 = por %p93, %p94
      %p96 = scmp.ne.s32.totalorder %s88, %s91
      %p97 = scmp.eq.s32.totalorder %s14, 0
      %p98 = por %p96, %p97
      %p99 = scmp.ne.s32.totalorder %s88, %s91
      %p100 = scmp.eq.s32.totalorder %s19, 1
      %p101 = por %p99, %p100
      %p102 = scmp.ne.s32.totalorder %s91, %s92
      %p103 = scmp.eq.s32.totalorder %s19, 0
      %p104 = por %p102, %p103
      %p105 = scmp.ne.s32.totalorder %s91, %s92
      %p106 = scmp.eq.s32.totalorder %s20, 1
      %p107 = por %p105, %p106
      %p109 = scmp.ne.s32.totalorder %s92, %s108
      %p110 = scmp.eq.s32.totalorder %s20, 0
      %p111 = por %p109, %p110
      %s112 = ssub.s32 %s22, %s29
      %p113 = scmp.eq.s32.totalorder %s112, 0
      %s115 = sadd.s32 %s114, 1
      %s116 = scalar_select %p113, %s114, %s115
      %p119 = pneg %p113
      %p120 = scmp.eq.s32.totalorder %s14, 1
      %p121 = por %p119, %p120
      %p122 = scmp.ne.s32.totalorder %s114, %s117
      %p123 = scmp.eq.s32.totalorder %s14, 0
      %p124 = por %p122, %p123
      %p125 = scmp.ne.s32.totalorder %s114, %s117
      %p126 = scmp.eq.s32.totalorder %s19, 1
      %p127 = por %p125, %p126
      %p128 = scmp.ne.s32.totalorder %s117, %s118
      %p129 = scmp.eq.s32.totalorder %s19, 0
      %p130 = por %p128, %p129
      %p131 = scmp.ne.s32.totalorder %s117, %s118
      %p132 = scmp.eq.s32.totalorder %s20, 1
      %p133 = por %p131, %p132
      %p135 = scmp.ne.s32.totalorder %s118, %s134
      %p136 = scmp.eq.s32.totalorder %s20, 0
      %p137 = por %p135, %p136
      %s139 = sadd.s32 %s138, 1
      %p142 = scmp.eq.s32.totalorder %s14, 1
      %p143 = scmp.ne.s32.totalorder %s138, %s140
      %p144 = scmp.eq.s32.totalorder %s14, 0
      %p145 = por %p143, %p144
      %p146 = scmp.ne.s32.totalorder %s138, %s140
      %p147 = scmp.eq.s32.totalorder %s19, 1
      %p148 = por %p146, %p147
      %p149 = scmp.ne.s32.totalorder %s140, %s141
      %p150 = scmp.eq.s32.totalorder %s19, 0
      %p151 = por %p149, %p150
      %p152 = scmp.ne.s32.totalorder %s140, %s141
      %p153 = scmp.eq.s32.totalorder %s20, 1
      %p154 = por %p152, %p153
      %p156 = scmp.ne.s32.totalorder %s141, %s155
      %p157 = scmp.eq.s32.totalorder %s20, 0
      %p158 = por %p156, %p157
      %s159 = ssub.s32 %s21, %s33
      %p160 = scmp.eq.s32.totalorder %s159, 0
      %s162 = sadd.s32 %s161, 1
      %s163 = scalar_select %p160, %s161, %s162
      %p166 = pneg %p160
      %p167 = scmp.eq.s32.totalorder %s14, 1
      %p168 = por %p166, %p167
      %p169 = scmp.ne.s32.totalorder %s161, %s164
      %p170 = scmp.eq.s32.totalorder %s14, 0
      %p171 = por %p169, %p170
      %p172 = scmp.ne.s32.totalorder %s161, %s164
      %p173 = scmp.eq.s32.totalorder %s19, 1
      %p174 = por %p172, %p173
      %p175 = scmp.ne.s32.totalorder %s164, %s165
      %p176 = scmp.eq.s32.totalorder %s19, 0
      %p177 = por %p175, %p176
      %p178 = scmp.ne.s32.totalorder %s164, %s165
      %p179 = scmp.eq.s32.totalorder %s20, 1
      %p180 = por %p178, %p179
      %p182 = scmp.ne.s32.totalorder %s165, %s181
      %p183 = scmp.eq.s32.totalorder %s20, 0
      %p184 = por %p182, %p183
      %p185 = scmp.le.s32.totalorder 1, %s14
      %p186 = scmp.lt.s32.totalorder %s14, 3
      %p187 = pnand %p185, %p186
      %p188 = pneg %p187
      // Predicated region
      $region9: #{tpu_custom_call.1} parent=5 // pred_check
        _
      $region10: #{tpu_custom_call.1} parent=5 // pred_check_branch
        %190 = sbr.rel (%p187) target = $region12
      $region11: #{tpu_custom_call.1} parent=5 // pred_region
        %s191 = ssub.s32 %s14, 1
        // Predicated region
        $region13: #{tpu_custom_call.1} parent=11 // pred_check
          %p192 = pneg %p78
        $region14: #{tpu_custom_call.1} parent=11 // pred_check_branch
          %194 = sbr.rel (%p192) target = $region16
        $region15: #{tpu_custom_call.1} parent=11 // pred_region
          %p195 = scmp.lt.s32.totalorder %s24, 0
          %s196 = scalar_select %p195, %s24, 0
          %s197 = smul.addr %s196, 4
          %s198 = scalar_lea.vmem %s1, %s197
        $region16: #{tpu_custom_call.1} parent=11 // pred_fallthru
          _
        // Predicated region
        $region17: #{tpu_custom_call.1} parent=11 // pred_check
          %p199 = pneg %p104
        $region18: #{tpu_custom_call.1} parent=11 // pred_check_branch
          %201 = sbr.rel (%p199) target = $region20
        $region19: #{tpu_custom_call.1} parent=11 // pred_region
          %p202 = scmp.lt.s32.totalorder %s24, 0
          %s203 = scalar_select %p202, %s24, 0
          %s204 = scalar_lea.vmem %s2, %s203
        $region20: #{tpu_custom_call.1} parent=11 // pred_fallthru
          _
        // Predicated region
        $region21: #{tpu_custom_call.1} parent=11 // pred_check
          %p205 = pneg %p130
        $region22: #{tpu_custom_call.1} parent=11 // pred_check_branch
          %207 = sbr.rel (%p205) target = $region24
        $region23: #{tpu_custom_call.1} parent=11 // pred_region
          %s208 = smul.u32 8, %s24
          %p209 = scmp.lt.s32.totalorder %s208, 7
          %s210 = scalar_select %p209, %s208, 7
          %s211 = smul.addr %s210, 4
          %s212 = scalar_lea.vmem %s3, %s211
          %s213 = smul.u32 8, %s24
        $region24: #{tpu_custom_call.1} parent=11 // pred_fallthru
          _
        // Predicated region
        $region25: #{tpu_custom_call.1} parent=11 // pred_check
          %p214 = pneg %p151
        $region26: #{tpu_custom_call.1} parent=11 // pred_check_branch
          %216 = sbr.rel (%p214) target = $region28
        $region27: #{tpu_custom_call.1} parent=11 // pred_region
          _
        $region28: #{tpu_custom_call.1} parent=11 // pred_fallthru
          _
      $region12: #{tpu_custom_call.1} parent=5 // pred_fallthru
        _
      %p217 = scmp.lt.s32.totalorder %s14, 2
      // Predicated region
      $region29: #{tpu_custom_call.1} parent=5 // pred_check
        %p218 = pneg %p217
      $region30: #{tpu_custom_call.1} parent=5 // pred_check_branch
        %220 = sbr.rel (%p218) target = $region32
      $region31: #{tpu_custom_call.1} parent=5 // pred_region
        // Predicated region
        $region33: #{tpu_custom_call.1} parent=31 // pred_check
          %p221 = pneg %p46
        $region34: #{tpu_custom_call.1} parent=31 // pred_check_branch
          %223 = sbr.rel (%p221) target = $region36
        $region35: #{tpu_custom_call.1} parent=31 // pred_region
          %p224 = scmp.lt.s32.totalorder %s21, 1
          %s225 = scalar_select %p224, %s21, 1
          %s226 = smul.addr %s225, 4
          %s227 = scalar_lea.vmem %s0, %s226
        $region36: #{tpu_custom_call.1} parent=31 // pred_fallthru
          _
      $region32: #{tpu_custom_call.1} parent=5 // pred_fallthru
        _
      %p228 = scmp.le.s32.totalorder 1, %s14
      %p229 = scmp.lt.s32.totalorder %s14, 3
      %p230 = pnand %p228, %p229
      %p231 = pneg %p230
      // Predicated region
      $region37: #{tpu_custom_call.1} parent=5 // pred_check
        _
      $region38: #{tpu_custom_call.1} parent=5 // pred_check_branch
        %233 = sbr.rel (%p230) target = $region40
      $region39: #{tpu_custom_call.1} parent=5 // pred_region
        %s234 = ssub.s32 %s14, 1
        %p235 = scmp.lt.s32.totalorder %s23, 1
        %s236 = scalar_select %p235, %s23, 1
        %s237 = smul.addr %s236, 4
        %s238 = scalar_lea.vmem %s0, %s237
        %p239 = pneg %p52
        %p240 = pneg %p49
        %p241 = scmp.lt.s32.totalorder %s24, 0
        %s242 = scalar_select %p241, %s24, 0
        %s243 = smul.addr %s242, 4
        %s244 = scalar_lea.vmem %s1, %s243
        %p245 = pneg %p78
        %p246 = pneg %p75
        %p247 = scmp.lt.s32.totalorder %s24, 0
        %s248 = scalar_select %p247, %s24, 0
        %s249 = scalar_lea.vmem %s2, %s248
        %p250 = pneg %p104
        %p251 = pneg %p101
        %s252 = smul.u32 8, %s24
        %p253 = scmp.lt.s32.totalorder %s252, 7
        %s254 = scalar_select %p253, %s252, 7
        %s255 = smul.addr %s254, 4
        %s256 = scalar_lea.vmem %s3, %s255
        %p257 = pneg %p130
        %p258 = pneg %p127
        %p259 = pneg %p151
        %p260 = pneg %p148
        %p261 = pneg %p177
        %p262 = pneg %p174
        %s263 = sand.u32 %s164, 1
        %s264 = scalar_lea.sflag [#allocation3], %s263
        %s265 = sand.u32 %s164, 1
        %s266 = smul.addr %s265, 8
        %s267 = scalar_lea.vmem [#allocation2], %s266
        %p268 = scmp.lt.s32.totalorder %s23, 1
        %s269 = scalar_select %p268, %s23, 1
        %s270 = smul.addr %s269, 4
        %s271 = scalar_lea.vmem %s0, %s270
        %p272 = scmp.lt.s32.totalorder %s24, 0
        %s273 = scalar_select %p272, %s24, 0
        %s274 = smul.addr %s273, 4
        %s275 = scalar_lea.vmem %s1, %s274
        %p276 = scmp.lt.s32.totalorder %s24, 0
        %s277 = scalar_select %p276, %s24, 0
        %s278 = scalar_lea.vmem %s2, %s277
        %s279 = smul.u32 8, %s24
        %p280 = scmp.lt.s32.totalorder %s279, 7
        %s281 = scalar_select %p280, %s279, 7
        %s282 = smul.addr %s281, 4
        %s283 = scalar_lea.vmem %s3, %s282
        %s284 = smul.u32 8, %s24
        %p286 = scmp.eq.s32.totalorder %s24, 0
        // Predicated region
        $region41: #{tpu_custom_call.1} parent=39 // pred_check
          %p287 = pneg %p286
        $region42: #{tpu_custom_call.1} parent=39 // pred_check_branch
          %289 = sbr.rel (%p287) target = $region44
        $region43: #{tpu_custom_call.1} parent=39 // pred_region
          %v290 = vld [vmem:[%s4] sm:$0x1]
          %v292 = vperm.slane %v290, 0
          %vm294 = vcmask 261120
          %295 = vst.msk [vmem:[%s267] sm:$0xff] %vm294, %v292
        $region44: #{tpu_custom_call.1} parent=39 // pred_fallthru
          _
        %v296 = vld [vmem:[%s271] sm:$0xf]
        %v297 = vld [vmem:[%s275] sm:$0xf]
        %v298 = vld [vmem:[%s275 + $0x4] sm:$0xf]
        %v299 = vld [vmem:[%s275 + $0x8] sm:$0xf]
        %v300 = vld [vmem:[%s275 + $0xc] sm:$0xf]
        %v301 = vld [vmem:[%s278] sm:$0x1]
        %v303 = vperm.slane %v301, 0
        %v309 = vunpack.c.l.b16 %v297
        %v310 = vunpack.c.l.b16 %v298
        %v311 = vunpack.c.l.b16 %v299
        %v312 = vunpack.c.l.b16 %v300
        %v313 = vpack.c.b16 %v310, %v309
        %v314 = vpack.c.b16 %v312, %v311
        %vm317 = vcmask 261120
        %v319 = vsel %vm317, %v296, 0
        %321 = vmatpush.bf16.msra.mxu0 0
        %322 = vmatpush.bf16.msra.mxu0 0
        %323 = vmatpush.bf16.msra.mxu0 0
        %324 = vmatpush.bf16.msra.mxu0 0
        %325 = vmatpush.bf16.msra.mxu0 0
        %326 = vmatpush.bf16.msra.mxu0 0
        %327 = vmatpush.bf16.msra.mxu0 %v314
        %328 = vmatpush.bf16.msra.mxu0 %v313
        %329 = vmatmul.bf16.gmra.mxu0 %v319
        %v330 = vpop.f32.mrf.mxu0
        %v331 = vadd.f32 %v303, %v330
        %v332 = vpop.f32.mrf.mxu0
        %333 = vdwg.mxu0
        %v334 = vmax.f32 %v331, 0.0
        %v335 = vld [vmem:[%s267] sm:$0xff]
        %v336 = vpack.c.bf16 %v334, %v334
        %v337 = vld [vmem:[%s283] sm:$0xf]
        %v338 = vld [vmem:[%s283 + $0x4] sm:$0xf]
        %v339 = vld [vmem:[%s283 + $0x8] sm:$0xf]
        %v340 = vld [vmem:[%s283 + $0xc] sm:$0xf]
        %v341 = vld [vmem:[%s283 + $0x10] sm:$0xf]
        %v342 = vld [vmem:[%s283 + $0x14] sm:$0xf]
        %v343 = vld [vmem:[%s283 + $0x18] sm:$0xf]
        %v344 = vld [vmem:[%s283 + $0x1c] sm:$0xf]
        %v353 = vunpack.c.l.b16 %v337
        %v354 = vunpack.c.l.b16 %v338
        %v355 = vunpack.c.l.b16 %v339
        %v356 = vunpack.c.l.b16 %v340
        %v357 = vunpack.c.l.b16 %v341
        %v358 = vunpack.c.l.b16 %v342
        %v359 = vunpack.c.l.b16 %v343
        %v360 = vunpack.c.l.b16 %v344
        %v361 = vpack.c.b16 %v354, %v353
        %v362 = vpack.c.b16 %v356, %v355
        %v363 = vpack.c.b16 %v358, %v357
        %v364 = vpack.c.b16 %v360, %v359
        %vm369 = vcmask 523264
        %v371 = vsel %vm369, %v336, 0
        %373 = vmatpush.bf16.msra.mxu0 0
        %374 = vmatpush.bf16.msra.mxu0 0
        %375 = vmatpush.bf16.msra.mxu0 0
        %376 = vmatpush.bf16.msra.mxu0 0
        %377 = vmatpush.bf16.msra.mxu0 %v364
        %378 = vmatpush.bf16.msra.mxu0 %v363
        %379 = vmatpush.bf16.msra.mxu0 %v362
        %380 = vmatpush.bf16.msra.mxu0 %v361
        %381 = vmatmul.bf16.gmra.mxu0 %v371
        %v382 = vpop.f32.mrf.mxu0
        %v383 = vadd.f32 0.0, %v382
        %v384 = vpop.f32.mrf.mxu0
        %385 = vdwg.mxu0
        %v386 = vadd.f32 %v335, %v383
        %387 = vst.msk [vmem:[%s267] sm:$0xff] %vm317, %v386
        %s388 = sand.u32 %s164, 1
        %s389 = scalar_lea.sflag [#allocation3], %s388
        %s390 = sand.u32 %s164, 1
        %s391 = smul.addr %s390, 8
        %s392 = scalar_lea.vmem [#allocation2], %s391
        // Predicated region
        $region45: #{tpu_custom_call.1} parent=39 // pred_check
          %p393 = pneg %p174
        $region46: #{tpu_custom_call.1} parent=39 // pred_check_branch
          %395 = sbr.rel (%p393) target = $region48
        $region47: #{tpu_custom_call.1} parent=39 // pred_region
          %397 = vsyncadd %s389, 0
          %s398 = smul.addr %s23, 8
          %s399 = scalar_lea.hbm %s5, %s398
          %s401 = sshll.u32 %s392, 4
          %s402 = int_to_ptr.vmem [resolvable:$true] %s401
          %s403 = sshll.u32 %s399, 4
          %s404 = int_to_ptr.hbm [resolvable:$true] %s403
          %406 = dma.vmem_to_hbm [thread:$0]  %s402, 128, %s404, %s389
        $region48: #{tpu_custom_call.1} parent=39 // pred_fallthru
          _
      $region40: #{tpu_custom_call.1} parent=5 // pred_fallthru
        _
      %p407 = scmp.le.s32.totalorder 2, %s14
      // Predicated region
      $region49: #{tpu_custom_call.1} parent=5 // pred_check
        %p408 = pneg %p407
      $region50: #{tpu_custom_call.1} parent=5 // pred_check_branch
        %410 = sbr.rel (%p408) target = $region52
      $region51: #{tpu_custom_call.1} parent=5 // pred_region
        %s411 = ssub.s32 %s14, 2
        // Predicated region
        $region53: #{tpu_custom_call.1} parent=51 // pred_check
          %p412 = pneg %p180
        $region54: #{tpu_custom_call.1} parent=51 // pred_check_branch
          %414 = sbr.rel (%p412) target = $region56
        $region55: #{tpu_custom_call.1} parent=51 // pred_region
          %s415 = sand.u32 %s165, 1
          %s416 = scalar_lea.sflag [#allocation3], %s415
          %s417 = sand.u32 %s165, 1
          %s418 = smul.addr %s417, 8
          %s419 = scalar_lea.vmem [#allocation2], %s418
          %421 = dma.done %s416, 128
        $region56: #{tpu_custom_call.1} parent=51 // pred_fallthru
          _
      $region52: #{tpu_custom_call.1} parent=5 // pred_fallthru
        _
    $region6: #{tpu_custom_call.1} parent=1 // loop_footer
      %s18 = sadd.s32 1, %s14
    $region7: #{tpu_custom_call.1} parent=1 // loop_footer_branch
      %13 = sbr.rel target = $region3
    $region8: #{tpu_custom_call.1} parent=1 // loop_exit
      _
    %422 = vsyncpa [#allocation3], 1
    %s423 = scalar_lea.sflag [#allocation3], 1
    %424 = vsyncpa %s423, 1

</llo_original>
